<compile_context>
chip_gen: v7x
topology: tpu7x:2x2x1
jax: 0.10.0
libtpu: 0.0.40
codegen_flags: <defaults>
</compile_context>

<pallas_src>
import jax
import jax.numpy as jnp
from jax.experimental import pallas as pl
from jax.experimental.pallas import tpu as pltpu


# ----------------------------------------------------------------------------
# Fused DenseLayer kernel (B_BLK batch samples per grid step, channels-last)
# ----------------------------------------------------------------------------
def _dense_layer_kernel(x_ref, s1_ref, t1_ref, w1_ref, b1_ref, w2_ref, b2_ref,
                        o_ref):
    B, L, Cin = x_ref.shape
    M = B * L
    Cout = b2_ref.shape[-1]

    x = x_ref[...].reshape(M, Cin)                                  # (M, Cin) f32

    # --- BN1 (inference affine) + ReLU ------------------------------ VPU f32
    h1 = jnp.maximum(x * s1_ref[...] + t1_ref[...], 0.0)

    # --- Conv1d(k=1) with BN2 pre-folded into (w1, b1), then ReLU ------- MXU
    h3 = jnp.maximum(
        jnp.dot(h1.astype(jnp.bfloat16), w1_ref[...],
                preferred_element_type=jnp.float32) + b1_ref[...],
        0.0)                                                        # (M, mid) f32

    # --- Conv1d(k=3, padding=1): ONE wide matmul vs (mid, 3*Cout), then the
    #     three tap outputs are row-shifted (XLU roll) and summed on the VPU.
    y = jnp.dot(h3.astype(jnp.bfloat16), w2_ref[...],
                preferred_element_type=jnp.float32)                 # (M, 3*Cout)
    y_prev = pltpu.roll(y[:, :Cout], shift=1, axis=0)      # row l <- tap0 @ h3[l-1]
    y_mid = y[:, Cout:2 * Cout]                            # row l <- tap1 @ h3[l]
    y_next = pltpu.roll(y[:, 2 * Cout:], shift=M - 1, axis=0)  # == shift -1 (non-neg)

    # Per-sample halo masks on the narrow (M, Cout) slabs: row index within
    # each packed sample, so rolls never leak across sample boundaries.
    row = jax.lax.broadcasted_iota(jnp.int32, (M, Cout), 0) % L
    h4 = (jnp.where(row == 0, 0.0, y_prev)
          + y_mid
          + jnp.where(row == L - 1, 0.0, y_next)
          + b2_ref[...])                                            # (M, Cout) f32

    # --- lane-dense single store of the concatenated [x, layer(x)] slab -----
    o_ref[...] = jnp.concatenate([x, h4], axis=-1).reshape(B, L, Cin + Cout)


def _pick_batch_block(n, l, max_rows=1024, min_grid=2):
    """Pack samples per grid step: target a few hundred matmul rows, keep the
    per-step VMEM slab small on all gens, and keep grid length >= 2 for v7x."""
    best = 1
    for b in range(1, n + 1):
        if n % b != 0:
            continue
        if b * l > max_rows:
            continue
        if n >= min_grid and n // b < min_grid:
            continue
        best = b
    return best


def dense_layer_forward(x_nlc, params, *, batch_block=None):
    """Channels-last forward: (N, L, Cin) f32 -> (N, L, Cin + Cout) f32."""
    N, L, Cin = x_nlc.shape
    mid = params["w1"].shape[1]
    Cout = params["b2"].shape[-1]
    Ctot = Cin + Cout

    if batch_block is None:
        batch_block = _pick_batch_block(N, L)
    assert N % batch_block == 0, (N, batch_block)
    grid = (N // batch_block,)

    out = pl.pallas_call(
        _dense_layer_kernel,
        out_shape=jax.ShapeDtypeStruct((N, L, Ctot), jnp.float32),
        grid=grid,
        in_specs=[
            pl.BlockSpec((batch_block, L, Cin), lambda n: (n, 0, 0)),  # x block
            pl.BlockSpec((1, Cin), lambda n: (0, 0)),                  # bn1 scale
            pl.BlockSpec((1, Cin), lambda n: (0, 0)),                  # bn1 shift
            pl.BlockSpec((Cin, mid), lambda n: (0, 0)),                # conv1 w (bf16, BN2 folded)
            pl.BlockSpec((1, mid), lambda n: (0, 0)),                  # conv1 b (BN2 folded)
            pl.BlockSpec((mid, 3 * Cout), lambda n: (0, 0)),           # conv2 w fused wide (bf16)
            pl.BlockSpec((1, Cout), lambda n: (0, 0)),                 # conv2 b
        ],
        out_specs=pl.BlockSpec((batch_block, L, Ctot), lambda n: (n, 0, 0)),
        compiler_params=pltpu.CompilerParams(
            dimension_semantics=("parallel",)),
    )(x_nlc.astype(jnp.float32),
      params["s1"], params["t1"],
      params["w1"], params["b1"],
      params["w2"], params["b2"])
    return out


def dense_layer_forward_ncl(x_ncl, params, *, batch_block=None):
    """Torch-layout adapter: (N, Cin, L) -> (N, Cin + Cout, L).

    NOTE: these transposes are pure HBM traffic; in a real model keep
    activations channels-last end-to-end and call dense_layer_forward directly.
    """
    x_nlc = jnp.transpose(x_ncl, (0, 2, 1))
    y = dense_layer_forward(x_nlc, params, batch_block=batch_block)
    return jnp.transpose(y, (0, 2, 1))


# ----------------------------------------------------------------------------
# Parameters: raw (module-like, f32) + kernel-ready preparation
# ----------------------------------------------------------------------------
def make_dense_layer_params(key, in_channels, middle_channels=128, out_channels=32):
    ks = jax.random.split(key, 12)

    def bn(kg, kb, km, kv, c):
        gamma = jax.random.uniform(kg, (c,), minval=0.5, maxval=1.5)
        beta = 0.1 * jax.random.normal(kb, (c,))
        mean = 0.1 * jax.random.normal(km, (c,))
        var = jax.random.uniform(kv, (c,), minval=0.5, maxval=1.5)
        scale = gamma / jnp.sqrt(var + 1e-5)   # eval-mode BN folded to affine (f32)
        shift = beta - mean * scale
        return scale.astype(jnp.float32), shift.astype(jnp.float32)

    s1, t1 = bn(ks[0], ks[1], ks[2], ks[3], in_channels)
    s2, t2 = bn(ks[4], ks[5], ks[6], ks[7], middle_channels)
    w1 = (jax.random.normal(ks[8], (in_channels, middle_channels), dtype=jnp.float32)
          / jnp.sqrt(float(in_channels)))
    b1 = 0.01 * jax.random.normal(ks[9], (middle_channels,), dtype=jnp.float32)
    w2 = (jax.random.normal(ks[10], (3, middle_channels, out_channels), dtype=jnp.float32)
          / jnp.sqrt(float(3 * middle_channels)))
    b2 = 0.01 * jax.random.normal(ks[11], (out_channels,), dtype=jnp.float32)
    return {
        "bn1_scale": s1, "bn1_shift": t1,
        "conv1_w": w1, "conv1_b": b1,
        "bn2_scale": s2, "bn2_shift": t2,
        "conv2_w": w2, "conv2_b": b2,
    }


def prepare_dense_layer_params(raw):
    """Fold BN2 into conv1 (f32 fold, bf16 cast) and fuse conv2's 3 taps into
    one (mid, 3*Cout) weight; reshape vectors to (1, C) lane rows."""
    s1, t1 = raw["bn1_scale"], raw["bn1_shift"]
    s2, t2 = raw["bn2_scale"], raw["bn2_shift"]
    w1, b1 = raw["conv1_w"], raw["conv1_b"]        # (Cin, mid), (mid,)
    w2, b2 = raw["conv2_w"], raw["conv2_b"]        # (3, mid, Cout), (Cout,)
    Cin, mid = w1.shape
    Cout = w2.shape[2]

    w1f = (w1 * s2[None, :]).astype(jnp.bfloat16)                   # BN2 scale folded
    b1f = (b1 * s2 + t2).astype(jnp.float32)                        # BN2 shift folded
    w2w = jnp.transpose(w2, (1, 0, 2)).reshape(mid, 3 * Cout).astype(jnp.bfloat16)

    return {
        "s1": s1.reshape(1, Cin).astype(jnp.float32),
        "t1": t1.reshape(1, Cin).astype(jnp.float32),
        "w1": w1f,
        "b1": b1f.reshape(1, mid),
        "w2": w2w,
        "b2": b2.reshape(1, Cout).astype(jnp.float32),
    }


# ----------------------------------------------------------------------------
# Pure-JAX f32 reference (unfolded module math, channels-last)
# ----------------------------------------------------------------------------
def dense_layer_reference_nlc(x_nlc, raw):
    hp = jax.lax.Precision.HIGHEST
    x = x_nlc.astype(jnp.float32)
    h1 = jnp.maximum(x * raw["bn1_scale"] + raw["bn1_shift"], 0.0)
    h2 = jnp.einsum("nlc,cm->nlm", h1, raw["conv1_w"], precision=hp) + raw["conv1_b"]
    h3 = jnp.maximum(h2 * raw["bn2_scale"] + raw["bn2_shift"], 0.0)
    L = x.shape[1]
    h3p = jnp.pad(h3, ((0, 0), (1, 1), (0, 0)))
    h4 = raw["conv2_b"]
    for k in range(3):
        h4 = h4 + jnp.einsum("nlm,mo->nlo", h3p[:, k:k + L, :], raw["conv2_w"][k],
                             precision=hp)
    return jnp.concatenate([x, h4], axis=-1)


if __name__ == "__main__":
    key = jax.random.PRNGKey(0)
    pkey, xkey = jax.random.split(key)

    # Small shapes consistent with the module: Cin=96 (so Cin+Cout=128 lanes),
    # middle=128, Cout=32 (module defaults), batch=4, length=64
    # -> B_BLK=2 packs 128 matmul rows per grid step, grid=(2,).
    in_channels, middle_channels, out_channels = 96, 128, 32
    batch, length = 4, 64

    raw = make_dense_layer_params(pkey, in_channels, middle_channels, out_channels)
    params = prepare_dense_layer_params(raw)
    x = jax.random.normal(xkey, (batch, length, in_channels), dtype=jnp.float32)

    fwd = jax.jit(dense_layer_forward)
    y = jax.block_until_ready(fwd(x, params))

    assert y.shape == (batch, length, in_channels + out_channels), y.shape
    # Pass-through channels must be bit-exact copies of x.
    assert bool(jnp.all(y[..., :in_channels] == x))
    # Conv path within bf16-operand / f32-accumulate tolerance of f32 reference.
    y_ref = dense_layer_reference_nlc(x, raw)
    max_err = float(jnp.max(jnp.abs(y - y_ref)))
    assert max_err < 1e-1, max_err

    # Torch-layout (NCL) adapter parity with the original module's I/O contract.
    y_ncl = jax.block_until_ready(
        jax.jit(dense_layer_forward_ncl)(jnp.transpose(x, (0, 2, 1)), params))
    assert y_ncl.shape == (batch, in_channels + out_channels, length), y_ncl.shape
    assert bool(jnp.allclose(y_ncl, jnp.transpose(y, (0, 2, 1)), atol=1e-6))

    print("KERNEL_OK")
</pallas_src>

<mosaic_0001>
module attributes {stable_mosaic.version = 11 : i64} {
  func.func @_dense_layer_kernel(%arg0: i32, %arg1: memref<2x64x96xf32, #tpu.memory_space<vmem>>, %arg2: memref<1x96xf32, #tpu.memory_space<vmem>>, %arg3: memref<1x96xf32, #tpu.memory_space<vmem>>, %arg4: memref<96x128xbf16, #tpu.memory_space<vmem>>, %arg5: memref<1x128xf32, #tpu.memory_space<vmem>>, %arg6: memref<128x96xbf16, #tpu.memory_space<vmem>>, %arg7: memref<1x32xf32, #tpu.memory_space<vmem>>, %arg8: memref<2x64x128xf32, #tpu.memory_space<vmem>>) attributes {dimension_semantics = [#tpu.dimension_semantics<parallel>], iteration_bounds = array<i64: 2>, scalar_prefetch = 0 : i64, scratch_operands = 0 : i64, tpu.core_type = #tpu.core_type<tc>, window_params = [{transform_indices = @transform_0, window_bounds = array<i64: 2, 64, 96>}, {pipeline_mode = #tpu.pipeline_mode<synchronous>, transform_indices = @transform_1, window_bounds = array<i64: 1, 96>}, {pipeline_mode = #tpu.pipeline_mode<synchronous>, transform_indices = @transform_2, window_bounds = array<i64: 1, 96>}, {pipeline_mode = #tpu.pipeline_mode<synchronous>, transform_indices = @transform_3, window_bounds = array<i64: 96, 128>}, {pipeline_mode = #tpu.pipeline_mode<synchronous>, transform_indices = @transform_4, window_bounds = array<i64: 1, 128>}, {pipeline_mode = #tpu.pipeline_mode<synchronous>, transform_indices = @transform_5, window_bounds = array<i64: 128, 96>}, {pipeline_mode = #tpu.pipeline_mode<synchronous>, transform_indices = @transform_6, window_bounds = array<i64: 1, 32>}, {transform_indices = @transform_7, window_bounds = array<i64: 2, 64, 128>}]} {
    %c0 = arith.constant 0 : index
    %c0_0 = arith.constant 0 : index
    %c0_1 = arith.constant 0 : index
    %0 = vector.load %arg1[%c0, %c0_0, %c0_1] : memref<2x64x96xf32, #tpu.memory_space<vmem>>, vector<2x64x96xf32>
    %1 = vector.shape_cast %0 : vector<2x64x96xf32> to vector<128x96xf32>
    %c0_2 = arith.constant 0 : index
    %c0_3 = arith.constant 0 : index
    %2 = vector.load %arg2[%c0_2, %c0_3] : memref<1x96xf32, #tpu.memory_space<vmem>>, vector<1x96xf32>
    %3 = vector.broadcast %2 : vector<1x96xf32> to vector<128x96xf32>
    %4 = arith.mulf %1, %3 : vector<128x96xf32>
    %c0_4 = arith.constant 0 : index
    %c0_5 = arith.constant 0 : index
    %5 = vector.load %arg3[%c0_4, %c0_5] : memref<1x96xf32, #tpu.memory_space<vmem>>, vector<1x96xf32>
    %6 = vector.broadcast %5 : vector<1x96xf32> to vector<128x96xf32>
    %7 = arith.addf %4, %6 : vector<128x96xf32>
    %cst = arith.constant 0.000000e+00 : f32
    %8 = vector.broadcast %cst : f32 to vector<128x96xf32>
    %9 = arith.maximumf %7, %8 : vector<128x96xf32>
    %10 = arith.truncf %9 : vector<128x96xf32> to vector<128x96xbf16>
    %c0_6 = arith.constant 0 : index
    %c0_7 = arith.constant 0 : index
    %11 = vector.load %arg4[%c0_6, %c0_7] : memref<96x128xbf16, #tpu.memory_space<vmem>>, vector<96x128xbf16>
    %cst_8 = arith.constant dense<0.000000e+00> : vector<128x128xf32>
    %12 = tpu.matmul %10, %11, %cst_8 {dimension_numbers = #tpu.dot_dimension_numbers<[1], [0], [0], [1], [0, 0, 1, 1], [], []>} : vector<128x96xbf16>, vector<96x128xbf16>, vector<128x128xf32> -> vector<128x128xf32>
    %c0_9 = arith.constant 0 : index
    %c0_10 = arith.constant 0 : index
    %13 = vector.load %arg5[%c0_9, %c0_10] : memref<1x128xf32, #tpu.memory_space<vmem>>, vector<1x128xf32>
    %14 = vector.broadcast %13 : vector<1x128xf32> to vector<128x128xf32>
    %15 = arith.addf %12, %14 : vector<128x128xf32>
    %cst_11 = arith.constant 0.000000e+00 : f32
    %16 = vector.broadcast %cst_11 : f32 to vector<128x128xf32>
    %17 = arith.maximumf %15, %16 : vector<128x128xf32>
    %18 = arith.truncf %17 : vector<128x128xf32> to vector<128x128xbf16>
    %c0_12 = arith.constant 0 : index
    %c0_13 = arith.constant 0 : index
    %19 = vector.load %arg6[%c0_12, %c0_13] : memref<128x96xbf16, #tpu.memory_space<vmem>>, vector<128x96xbf16>
    %cst_14 = arith.constant dense<0.000000e+00> : vector<128x96xf32>
    %20 = tpu.matmul %18, %19, %cst_14 {dimension_numbers = #tpu.dot_dimension_numbers<[1], [0], [0], [1], [0, 0, 1, 1], [], []>} : vector<128x128xbf16>, vector<128x96xbf16>, vector<128x96xf32> -> vector<128x96xf32>
    %21 = vector.extract_strided_slice %20 {offsets = [0, 0], sizes = [128, 32], strides = [1, 1]} : vector<128x96xf32> to vector<128x32xf32>
    %c1_i32 = arith.constant 1 : i32
    %22 = tpu.dynamic_rotate %21 by %c1_i32 dim 0 : vector<128x32xf32>, i32 -> vector<128x32xf32>
    %23 = vector.extract_strided_slice %20 {offsets = [0, 32], sizes = [128, 32], strides = [1, 1]} : vector<128x96xf32> to vector<128x32xf32>
    %24 = vector.extract_strided_slice %20 {offsets = [0, 64], sizes = [128, 32], strides = [1, 1]} : vector<128x96xf32> to vector<128x32xf32>
    %c127_i32 = arith.constant 127 : i32
    %25 = tpu.dynamic_rotate %24 by %c127_i32 dim 0 : vector<128x32xf32>, i32 -> vector<128x32xf32>
    %26 = tpu.iota {dimensions = array<i32: 0>} : vector<128x32xi32>
    %c64_i32 = arith.constant 64 : i32
    %c0_i32 = arith.constant 0 : i32
    %27 = arith.cmpi eq, %c64_i32, %c0_i32 : i32
    %c1_i32_15 = arith.constant 1 : i32
    %28 = arith.select %27, %c1_i32_15, %c64_i32 : i32
    %29 = vector.broadcast %28 : i32 to vector<128x32xi32>
    %30 = arith.remsi %26, %29 : vector<128x32xi32>
    %c0_i32_16 = arith.constant 0 : i32
    %31 = vector.broadcast %c0_i32_16 : i32 to vector<128x32xi32>
    %32 = arith.cmpi ne, %30, %31 : vector<128x32xi32>
    %c0_i32_17 = arith.constant 0 : i32
    %33 = vector.broadcast %c0_i32_17 : i32 to vector<128x32xi32>
    %34 = arith.cmpi slt, %30, %33 : vector<128x32xi32>
    %c0_i32_18 = arith.constant 0 : i32
    %35 = arith.cmpi slt, %28, %c0_i32_18 : i32
    %36 = vector.broadcast %35 : i1 to vector<128x32xi1>
    %37 = vector.broadcast %36 : vector<128x32xi1> to vector<128x32xi1>
    %38 = arith.xori %34, %37 : vector<128x32xi1>
    %39 = arith.andi %38, %32 : vector<128x32xi1>
    %40 = vector.broadcast %28 : i32 to vector<128x32xi32>
    %41 = arith.addi %30, %40 : vector<128x32xi32>
    %42 = arith.select %39, %41, %30 : vector<128x32xi1>, vector<128x32xi32>
    %c0_i32_19 = arith.constant 0 : i32
    %43 = vector.broadcast %c0_i32_19 : i32 to vector<128x32xi32>
    %44 = arith.cmpi eq, %42, %43 : vector<128x32xi32>
    %cst_20 = arith.constant 0.000000e+00 : f32
    %45 = vector.broadcast %cst_20 : f32 to vector<128x32xf32>
    %46 = arith.select %44, %45, %22 : vector<128x32xi1>, vector<128x32xf32>
    %47 = arith.addf %46, %23 : vector<128x32xf32>
    %c63_i32 = arith.constant 63 : i32
    %48 = vector.broadcast %c63_i32 : i32 to vector<128x32xi32>
    %49 = arith.cmpi eq, %42, %48 : vector<128x32xi32>
    %cst_21 = arith.constant 0.000000e+00 : f32
    %50 = vector.broadcast %cst_21 : f32 to vector<128x32xf32>
    %51 = arith.select %49, %50, %25 : vector<128x32xi1>, vector<128x32xf32>
    %52 = arith.addf %47, %51 : vector<128x32xf32>
    %c0_22 = arith.constant 0 : index
    %c0_23 = arith.constant 0 : index
    %53 = vector.load %arg7[%c0_22, %c0_23] : memref<1x32xf32, #tpu.memory_space<vmem>>, vector<1x32xf32>
    %54 = vector.broadcast %53 : vector<1x32xf32> to vector<128x32xf32>
    %55 = arith.addf %52, %54 : vector<128x32xf32>
    %56 = tpu.concatenate %1, %55 in 1 : vector<128x96xf32>, vector<128x32xf32> -> vector<128x128xf32>
    %57 = vector.shape_cast %56 : vector<128x128xf32> to vector<2x64x128xf32>
    %c0_24 = arith.constant 0 : index
    %c0_25 = arith.constant 0 : index
    %c0_26 = arith.constant 0 : index
    %58 = vector.load %arg8[%c0_24, %c0_25, %c0_26] : memref<2x64x128xf32, #tpu.memory_space<vmem>>, vector<2x64x128xf32>
    tpu.vector_store %arg8[%c0_24, %c0_25, %c0_26], %57 {strides = array<i32>} : memref<2x64x128xf32, #tpu.memory_space<vmem>>, vector<2x64x128xf32>,
    return
  }
  func.func @transform_0(%arg0: i32) -> (i32, i32, i32) {
    %c0_i32 = arith.constant 0 : i32
    %c0_i32_0 = arith.constant 0 : i32
    %c0_i32_1 = arith.constant 0 : i32
    return %arg0, %c0_i32, %c0_i32_0 : i32, i32, i32
  }
  func.func @transform_1(%arg0: i32) -> (i32, i32) {
    %c0_i32 = arith.constant 0 : i32
    %c0_i32_0 = arith.constant 0 : i32
    %c0_i32_1 = arith.constant 0 : i32
    return %c0_i32, %c0_i32_0 : i32, i32
  }
  func.func @transform_2(%arg0: i32) -> (i32, i32) {
    %c0_i32 = arith.constant 0 : i32
    %c0_i32_0 = arith.constant 0 : i32
    %c0_i32_1 = arith.constant 0 : i32
    return %c0_i32, %c0_i32_0 : i32, i32
  }
  func.func @transform_3(%arg0: i32) -> (i32, i32) {
    %c0_i32 = arith.constant 0 : i32
    %c0_i32_0 = arith.constant 0 : i32
    %c0_i32_1 = arith.constant 0 : i32
    return %c0_i32, %c0_i32_0 : i32, i32
  }
  func.func @transform_4(%arg0: i32) -> (i32, i32) {
    %c0_i32 = arith.constant 0 : i32
    %c0_i32_0 = arith.constant 0 : i32
    %c0_i32_1 = arith.constant 0 : i32
    return %c0_i32, %c0_i32_0 : i32, i32
  }
  func.func @transform_5(%arg0: i32) -> (i32, i32) {
    %c0_i32 = arith.constant 0 : i32
    %c0_i32_0 = arith.constant 0 : i32
    %c0_i32_1 = arith.constant 0 : i32
    return %c0_i32, %c0_i32_0 : i32, i32
  }
  func.func @transform_6(%arg0: i32) -> (i32, i32) {
    %c0_i32 = arith.constant 0 : i32
    %c0_i32_0 = arith.constant 0 : i32
    %c0_i32_1 = arith.constant 0 : i32
    return %c0_i32, %c0_i32_0 : i32, i32
  }
  func.func @transform_7(%arg0: i32) -> (i32, i32, i32) {
    %c0_i32 = arith.constant 0 : i32
    %c0_i32_0 = arith.constant 0 : i32
    %c0_i32_1 = arith.constant 0 : i32
    return %arg0, %c0_i32, %c0_i32_0 : i32, i32, i32
  }
}

</mosaic_0001>

<llo_original>
// kernel: dense_layer_forward.1
$region0: #{dense_layer_forward.1}
  #allocation0 [shape = 'u32[]', space=smem, size = 0x4, offset = 0x4, fixed_abs, tag = 'smem constant byte address 0x4 - core index']
  #allocation1 [shape = 'u32[144,128]{1,0:T(1,128)}', space=vmem, size = 0x12000, scoped, tag = 'internal scratch']
  %s0 = inlined_call_operand.hbm [shape: f32[4,64,96], index: 0, kind: input, shape index: {}]
  %s1 = inlined_call_operand.vmem [shape: f32[1,96], index: 1, kind: input, shape index: {}]
  %s2 = inlined_call_operand.vmem [shape: f32[1,96], index: 2, kind: input, shape index: {}]
  %s3 = inlined_call_operand.vmem [shape: bf16[96,128], index: 3, kind: input, shape index: {}]
  %s4 = inlined_call_operand.vmem [shape: f32[1,128], index: 4, kind: input, shape index: {}]
  %s5 = inlined_call_operand.vmem [shape: bf16[128,96], index: 5, kind: input, shape index: {}]
  %s6 = inlined_call_operand.vmem [shape: f32[1,32], index: 6, kind: input, shape index: {}]
  %s7 = inlined_call_operand.hbm [shape: f32[4,64,128], index: 7, kind: output, shape index: {}]
  %s8 = sld [smem:[#allocation0]]
  $region65: #{dense_layer_forward.1} parent=0
    _
  %s10 = ssub.s32 1, %s8
  %s11 = scalar_select 0, %s10, %s8
  $region1: #{dense_layer_forward.1} parent=0
    #allocation2 [shape = 'u8[131072]{0}', space=vmem, size = 0x20000, scoped, tag = 'input window, operand 0']
    #allocation3 [shape = 's32[2]{0}', space=sflag, size = 0x8, scoped, tag = 'scoped memory for dense_layer_forward.1']
    #allocation4 [shape = 's32[2]{0}', space=sflag, size = 0x8, scoped, tag = 'scoped memory for dense_layer_forward.1']
    #allocation5 [shape = 'u8[131072]{0}', space=vmem, size = 0x20000, scoped, tag = 'output window, operand 0']
    %12 = vsyncpa [#allocation3], 0
    %s13 = scalar_lea.sflag [#allocation3], 1
    %14 = vsyncpa %s13, 0
    %15 = vsyncpa [#allocation4], 0
    %s16 = scalar_lea.sflag [#allocation4], 1
    %17 = vsyncpa %s16, 0
    loop: start=0, step=1, limit=4
    $region2: #{dense_layer_forward.1} parent=1 // loop_pre_header
      _
    $region3: #{dense_layer_forward.1} parent=1 // loop_header
      %s19 = sphi 0, %s23
      %p20 = scmp.ge.s32.totalorder %s19, 4
      %s29 = sphi 0, %s31
      %s32 = sphi 0, %s29
      %s33 = sphi 0, %s32
      %s49 = sphi 0, %s33
      %s53 = sphi 0, %s53
      %s55 = sphi 0, %s53
      %s56 = sphi 0, %s55
      %s70 = sphi 0, %s56
      %s74 = sphi 0, %s74
      %s76 = sphi 0, %s74
      %s77 = sphi 0, %s76
      %s91 = sphi 0, %s77
      %s95 = sphi 0, %s95
      %s97 = sphi 0, %s95
      %s98 = sphi 0, %s97
      %s112 = sphi 0, %s98
      %s116 = sphi 0, %s116
      %s118 = sphi 0, %s116
      %s119 = sphi 0, %s118
      %s133 = sphi 0, %s119
      %s137 = sphi 0, %s137
      %s139 = sphi 0, %s137
      %s140 = sphi 0, %s139
      %s154 = sphi 0, %s140
      %s158 = sphi 0, %s158
      %s160 = sphi 0, %s158
      %s161 = sphi 0, %s160
      %s175 = sphi 0, %s161
      %s181 = sphi 0, %s183
      %s184 = sphi 0, %s181
      %s185 = sphi 0, %s184
      %s201 = sphi 0, %s185
    $region4: #{dense_layer_forward.1} parent=1 // loop_header_branch
      %22 = sbr.rel (%p20) target = $region8
    $region5: #{dense_layer_forward.1} parent=1 // loop_body
      %s24 = ssub.s32 %s19, 1
      %s25 = ssub.s32 %s19, 2
      %s26 = sadd.s32 %s19, 1
      %s27 = ssub.s32 %s19, %s26
      %p28 = scmp.eq.s32.totalorder %s27, 0
      %s30 = sadd.s32 %s29, 1
      %s31 = scalar_select %p28, %s29, %s30
      %p34 = pneg %p28
      %p35 = scmp.eq.s32.totalorder %s19, 1
      %p36 = por %p34, %p35
      %p37 = scmp.ne.s32.totalorder %s29, %s32
      %p38 = scmp.eq.s32.totalorder %s19, 0
      %p39 = por %p37, %p38
      %p40 = scmp.ne.s32.totalorder %s29, %s32
      %p41 = scmp.eq.s32.totalorder %s24, 1
      %p42 = por %p40, %p41
      %p43 = scmp.ne.s32.totalorder %s32, %s33
      %p44 = scmp.eq.s32.totalorder %s24, 0
      %p45 = por %p43, %p44
      %p46 = scmp.ne.s32.totalorder %s32, %s33
      %p47 = scmp.eq.s32.totalorder %s25, 1
      %p48 = por %p46, %p47
      %p50 = scmp.ne.s32.totalorder %s33, %s49
      %p51 = scmp.eq.s32.totalorder %s25, 0
      %p52 = por %p50, %p51
      %s54 = sadd.s32 %s53, 1
      %p57 = scmp.eq.s32.totalorder %s19, 1
      %p58 = scmp.ne.s32.totalorder %s53, %s55
      %p59 = scmp.eq.s32.totalorder %s19, 0
      %p60 = por %p58, %p59
      %p61 = scmp.ne.s32.totalorder %s53, %s55
      %p62 = scmp.eq.s32.totalorder %s24, 1
      %p63 = por %p61, %p62
      %p64 = scmp.ne.s32.totalorder %s55, %s56
      %p65 = scmp.eq.s32.totalorder %s24, 0
      %p66 = por %p64, %p65
      %p67 = scmp.ne.s32.totalorder %s55, %s56
      %p68 = scmp.eq.s32.totalorder %s25, 1
      %p69 = por %p67, %p68
      %p71 = scmp.ne.s32.totalorder %s56, %s70
      %p72 = scmp.eq.s32.totalorder %s25, 0
      %p73 = por %p71, %p72
      %s75 = sadd.s32 %s74, 1
      %p78 = scmp.eq.s32.totalorder %s19, 1
      %p79 = scmp.ne.s32.totalorder %s74, %s76
      %p80 = scmp.eq.s32.totalorder %s19, 0
      %p81 = por %p79, %p80
      %p82 = scmp.ne.s32.totalorder %s74, %s76
      %p83 = scmp.eq.s32.totalorder %s24, 1
      %p84 = por %p82, %p83
      %p85 = scmp.ne.s32.totalorder %s76, %s77
      %p86 = scmp.eq.s32.totalorder %s24, 0
      %p87 = por %p85, %p86
      %p88 = scmp.ne.s32.totalorder %s76, %s77
      %p89 = scmp.eq.s32.totalorder %s25, 1
      %p90 = por %p88, %p89
      %p92 = scmp.ne.s32.totalorder %s77, %s91
      %p93 = scmp.eq.s32.totalorder %s25, 0
      %p94 = por %p92, %p93
      %s96 = sadd.s32 %s95, 1
      %p99 = scmp.eq.s32.totalorder %s19, 1
      %p100 = scmp.ne.s32.totalorder %s95, %s97
      %p101 = scmp.eq.s32.totalorder %s19, 0
      %p102 = por %p100, %p101
      %p103 = scmp.ne.s32.totalorder %s95, %s97
      %p104 = scmp.eq.s32.totalorder %s24, 1
      %p105 = por %p103, %p104
      %p106 = scmp.ne.s32.totalorder %s97, %s98
      %p107 = scmp.eq.s32.totalorder %s24, 0
      %p108 = por %p106, %p107
      %p109 = scmp.ne.s32.totalorder %s97, %s98
      %p110 = scmp.eq.s32.totalorder %s25, 1
      %p111 = por %p109, %p110
      %p113 = scmp.ne.s32.totalorder %s98, %s112
      %p114 = scmp.eq.s32.totalorder %s25, 0
      %p115 = por %p113, %p114
      %s117 = sadd.s32 %s116, 1
      %p120 = scmp.eq.s32.totalorder %s19, 1
      %p121 = scmp.ne.s32.totalorder %s116, %s118
      %p122 = scmp.eq.s32.totalorder %s19, 0
      %p123 = por %p121, %p122
      %p124 = scmp.ne.s32.totalorder %s116, %s118
      %p125 = scmp.eq.s32.totalorder %s24, 1
      %p126 = por %p124, %p125
      %p127 = scmp.ne.s32.totalorder %s118, %s119
      %p128 = scmp.eq.s32.totalorder %s24, 0
      %p129 = por %p127, %p128
      %p130 = scmp.ne.s32.totalorder %s118, %s119
      %p131 = scmp.eq.s32.totalorder %s25, 1
      %p132 = por %p130, %p131
      %p134 = scmp.ne.s32.totalorder %s119, %s133
      %p135 = scmp.eq.s32.totalorder %s25, 0
      %p136 = por %p134, %p135
      %s138 = sadd.s32 %s137, 1
      %p141 = scmp.eq.s32.totalorder %s19, 1
      %p142 = scmp.ne.s32.totalorder %s137, %s139
      %p143 = scmp.eq.s32.totalorder %s19, 0
      %p144 = por %p142, %p143
      %p145 = scmp.ne.s32.totalorder %s137, %s139
      %p146 = scmp.eq.s32.totalorder %s24, 1
      %p147 = por %p145, %p146
      %p148 = scmp.ne.s32.totalorder %s139, %s140
      %p149 = scmp.eq.s32.totalorder %s24, 0
      %p150 = por %p148, %p149
      %p151 = scmp.ne.s32.totalorder %s139, %s140
      %p152 = scmp.eq.s32.totalorder %s25, 1
      %p153 = por %p151, %p152
      %p155 = scmp.ne.s32.totalorder %s140, %s154
      %p156 = scmp.eq.s32.totalorder %s25, 0
      %p157 = por %p155, %p156
      %s159 = sadd.s32 %s158, 1
      %p162 = scmp.eq.s32.totalorder %s19, 1
      %p163 = scmp.ne.s32.totalorder %s158, %s160
      %p164 = scmp.eq.s32.totalorder %s19, 0
      %p165 = por %p163, %p164
      %p166 = scmp.ne.s32.totalorder %s158, %s160
      %p167 = scmp.eq.s32.totalorder %s24, 1
      %p168 = por %p166, %p167
      %p169 = scmp.ne.s32.totalorder %s160, %s161
      %p170 = scmp.eq.s32.totalorder %s24, 0
      %p171 = por %p169, %p170
      %p172 = scmp.ne.s32.totalorder %s160, %s161
      %p173 = scmp.eq.s32.totalorder %s25, 1
      %p174 = por %p172, %p173
      %p176 = scmp.ne.s32.totalorder %s161, %s175
      %p177 = scmp.eq.s32.totalorder %s25, 0
      %p178 = por %p176, %p177
      %s179 = ssub.s32 %s19, %s26
      %p180 = scmp.eq.s32.totalorder %s179, 0
      %s182 = sadd.s32 %s181, 1
      %s183 = scalar_select %p180, %s181, %s182
      %p186 = pneg %p180
      %p187 = scmp.eq.s32.totalorder %s19, 1
      %p188 = por %p186, %p187
      %p189 = scmp.ne.s32.totalorder %s181, %s184
      %p190 = scmp.eq.s32.totalorder %s19, 0
      %p191 = por %p189, %p190
      %p192 = scmp.ne.s32.totalorder %s181, %s184
      %p193 = scmp.eq.s32.totalorder %s24, 1
      %p194 = por %p192, %p193
      %p195 = scmp.ne.s32.totalorder %s184, %s185
      %p196 = scmp.eq.s32.totalorder %s24, 0
      %p197 = por %p195, %p196
      %p198 = scmp.ne.s32.totalorder %s184, %s185
      %p199 = scmp.eq.s32.totalorder %s25, 1
      %p200 = por %p198, %p199
      %p202 = scmp.ne.s32.totalorder %s185, %s201
      %p203 = scmp.eq.s32.totalorder %s25, 0
      %p204 = por %p202, %p203
      %p205 = scmp.le.s32.totalorder 1, %s19
      %p206 = scmp.lt.s32.totalorder %s19, 3
      %p207 = pnand %p205, %p206
      %p208 = pneg %p207
      // Predicated region
      $region9: #{dense_layer_forward.1} parent=5 // pred_check
        _
      $region10: #{dense_layer_forward.1} parent=5 // pred_check_branch
        %210 = sbr.rel (%p207) target = $region12
      $region11: #{dense_layer_forward.1} parent=5 // pred_region
        %s211 = ssub.s32 %s19, 1
        // Predicated region
        $region13: #{dense_layer_forward.1} parent=11 // pred_check
          %p212 = pneg %p66
        $region14: #{dense_layer_forward.1} parent=11 // pred_check_branch
          %214 = sbr.rel (%p212) target = $region16
        $region15: #{dense_layer_forward.1} parent=11 // pred_region
          _
        $region16: #{dense_layer_forward.1} parent=11 // pred_fallthru
          _
        // Predicated region
        $region17: #{dense_layer_forward.1} parent=11 // pred_check
          %p215 = pneg %p87
        $region18: #{dense_layer_forward.1} parent=11 // pred_check_branch
          %217 = sbr.rel (%p215) target = $region20
        $region19: #{dense_layer_forward.1} parent=11 // pred_region
          _
        $region20: #{dense_layer_forward.1} parent=11 // pred_fallthru
          _
        // Predicated region
        $region21: #{dense_layer_forward.1} parent=11 // pred_check
          %p218 = pneg %p108
        $region22: #{dense_layer_forward.1} parent=11 // pred_check_branch
          %220 = sbr.rel (%p218) target = $region24
        $region23: #{dense_layer_forward.1} parent=11 // pred_region
          _
        $region24: #{dense_layer_forward.1} parent=11 // pred_fallthru
          _
        // Predicated region
        $region25: #{dense_layer_forward.1} parent=11 // pred_check
          %p221 = pneg %p129
        $region26: #{dense_layer_forward.1} parent=11 // pred_check_branch
          %223 = sbr.rel (%p221) target = $region28
        $region27: #{dense_layer_forward.1} parent=11 // pred_region
          _
        $region28: #{dense_layer_forward.1} parent=11 // pred_fallthru
          _
        // Predicated region
        $region29: #{dense_layer_forward.1} parent=11 // pred_check
          %p224 = pneg %p150
        $region30: #{dense_layer_forward.1} parent=11 // pred_check_branch
          %226 = sbr.rel (%p224) target = $region32
        $region31: #{dense_layer_forward.1} parent=11 // pred_region
          _
        $region32: #{dense_layer_forward.1} parent=11 // pred_fallthru
          _
        // Predicated region
        $region33: #{dense_layer_forward.1} parent=11 // pred_check
          %p227 = pneg %p171
        $region34: #{dense_layer_forward.1} parent=11 // pred_check_branch
          %229 = sbr.rel (%p227) target = $region36
        $region35: #{dense_layer_forward.1} parent=11 // pred_region
          _
        $region36: #{dense_layer_forward.1} parent=11 // pred_fallthru
          _
      $region12: #{dense_layer_forward.1} parent=5 // pred_fallthru
        _
      %p230 = scmp.lt.s32.totalorder %s19, 2
      // Predicated region
      $region37: #{dense_layer_forward.1} parent=5 // pred_check
        %p231 = pneg %p230
      $region38: #{dense_layer_forward.1} parent=5 // pred_check_branch
        %233 = sbr.rel (%p231) target = $region40
      $region39: #{dense_layer_forward.1} parent=5 // pred_region
        // Predicated region
        $region41: #{dense_layer_forward.1} parent=39 // pred_check
          %p234 = pneg %p39
        $region42: #{dense_layer_forward.1} parent=39 // pred_check_branch
          %236 = sbr.rel (%p234) target = $region44
        $region43: #{dense_layer_forward.1} parent=39 // pred_region
          %s237 = sand.u32 %s29, 1
          %s238 = scalar_lea.sflag [#allocation3], %s237
          %s239 = sand.u32 %s29, 1
          %s240 = smul.addr %s239, 128
          %s241 = scalar_lea.vmem [#allocation2], %s240
          %s242 = smul.u32 2, %s19
          %s244 = ssub.s32 2048, 2048
          %245 = vsyncadd %s238, %s244
          %s246 = smul.addr %s242, 8
          %s247 = smul.addr %s246, 128
          %s248 = scalar_lea.hbm %s0, %s247
          %s249 = sshll.u32 %s241, 4
          %s250 = int_to_ptr.vmem [resolvable:$true] %s249
          %255 = dma.hbm_to_vmem [thread:$0]  %s248, 2048, %s250, %s238, 128, 128, 8
        $region44: #{dense_layer_forward.1} parent=39 // pred_fallthru
          _
      $region40: #{dense_layer_forward.1} parent=5 // pred_fallthru
        _
      %p256 = scmp.le.s32.totalorder 1, %s19
      %p257 = scmp.lt.s32.totalorder %s19, 3
      %p258 = pnand %p256, %p257
      %p259 = pneg %p258
      // Predicated region
      $region45: #{dense_layer_forward.1} parent=5 // pred_check
        _
      $region46: #{dense_layer_forward.1} parent=5 // pred_check_branch
        %261 = sbr.rel (%p258) target = $region48
      $region47: #{dense_layer_forward.1} parent=5 // pred_region
        %s262 = ssub.s32 %s19, 1
        %s263 = sand.u32 %s32, 1
        %s264 = scalar_lea.sflag [#allocation3], %s263
        %s265 = sand.u32 %s32, 1
        %s266 = smul.addr %s265, 128
        %s267 = scalar_lea.vmem [#allocation2], %s266
        // Predicated region
        $region49: #{dense_layer_forward.1} parent=47 // pred_check
          %p268 = pneg %p45
        $region50: #{dense_layer_forward.1} parent=47 // pred_check_branch
          %270 = sbr.rel (%p268) target = $region52
        $region51: #{dense_layer_forward.1} parent=47 // pred_region
          %271 = dma.done %s264, 2048
        $region52: #{dense_layer_forward.1} parent=47 // pred_fallthru
          _
        %s272 = sand.u32 %s32, 1
        %s273 = scalar_lea.sflag [#allocation3], %s272
        %s274 = sand.u32 %s32, 1
        %s275 = smul.addr %s274, 128
        %s276 = scalar_lea.vmem [#allocation2], %s275
        %p277 = pneg %p45
        %p278 = pneg %p42
        %p279 = pneg %p66
        %p280 = pneg %p63
        %p281 = pneg %p87
        %p282 = pneg %p84
        %p283 = pneg %p108
        %p284 = pneg %p105
        %p285 = pneg %p129
        %p286 = pneg %p126
        %p287 = pneg %p150
        %p288 = pneg %p147
        %p289 = pneg %p171
        %p290 = pneg %p168
        %p291 = pneg %p197
        %p292 = pneg %p194
        %s293 = sand.u32 %s184, 1
        %s294 = scalar_lea.sflag [#allocation4], %s293
        %s295 = sand.u32 %s184, 1
        %s296 = smul.addr %s295, 128
        %s297 = scalar_lea.vmem [#allocation5], %s296
        %s298 = smul.u32 2, %s24
        %s299 = smul.u32 2, %s24
        %v301 = vld [vmem:[%s267] sm:$0xff]
        %v302 = vld [vmem:[%s267 + $0x8] sm:$0xff]
        %v303 = vld [vmem:[%s267 + $0x10] sm:$0xff]
        %v304 = vld [vmem:[%s267 + $0x18] sm:$0xff]
        %v305 = vld [vmem:[%s267 + $0x20] sm:$0xff]
        %v306 = vld [vmem:[%s267 + $0x28] sm:$0xff]
        %v307 = vld [vmem:[%s267 + $0x30] sm:$0xff]
        %v308 = vld [vmem:[%s267 + $0x38] sm:$0xff]
        %v309 = vld [vmem:[%s267 + $0x40] sm:$0xff]
        %v310 = vld [vmem:[%s267 + $0x48] sm:$0xff]
        %v311 = vld [vmem:[%s267 + $0x50] sm:$0xff]
        %v312 = vld [vmem:[%s267 + $0x58] sm:$0xff]
        %v313 = vld [vmem:[%s267 + $0x60] sm:$0xff]
        %v314 = vld [vmem:[%s267 + $0x68] sm:$0xff]
        %v315 = vld [vmem:[%s267 + $0x70] sm:$0xff]
        %v316 = vld [vmem:[%s267 + $0x78] sm:$0xff]
        %v317 = vld [vmem:[%s1] sm:$0x1]
        %v319 = vlaneseq
        %v320 = vshrl.u32 %v319, 7
        %v321 = vsub.s32 0, %v320
        %v322 = vrot.slane %v317, %v321
        %v324 = vmul.f32 %v301, %v322
        %v325 = vmul.f32 %v302, %v322
        %v326 = vmul.f32 %v303, %v322
        %v327 = vmul.f32 %v304, %v322
        %v328 = vmul.f32 %v305, %v322
        %v329 = vmul.f32 %v306, %v322
        %v330 = vmul.f32 %v307, %v322
        %v331 = vmul.f32 %v308, %v322
        %v332 = vmul.f32 %v309, %v322
        %v333 = vmul.f32 %v310, %v322
        %v334 = vmul.f32 %v311, %v322
        %v335 = vmul.f32 %v312, %v322
        %v336 = vmul.f32 %v313, %v322
        %v337 = vmul.f32 %v314, %v322
        %v338 = vmul.f32 %v315, %v322
        %v339 = vmul.f32 %v316, %v322
        %v340 = vld [vmem:[%s2] sm:$0x1]
        %v342 = vlaneseq
        %v343 = vshrl.u32 %v342, 7
        %v344 = vsub.s32 0, %v343
        %v345 = vrot.slane %v340, %v344
        %v347 = vadd.f32 %v324, %v345
        %v348 = vadd.f32 %v325, %v345
        %v349 = vadd.f32 %v326, %v345
        %v350 = vadd.f32 %v327, %v345
        %v351 = vadd.f32 %v328, %v345
        %v352 = vadd.f32 %v329, %v345
        %v353 = vadd.f32 %v330, %v345
        %v354 = vadd.f32 %v331, %v345
        %v355 = vadd.f32 %v332, %v345
        %v356 = vadd.f32 %v333, %v345
        %v357 = vadd.f32 %v334, %v345
        %v358 = vadd.f32 %v335, %v345
        %v359 = vadd.f32 %v336, %v345
        %v360 = vadd.f32 %v337, %v345
        %v361 = vadd.f32 %v338, %v345
        %v362 = vadd.f32 %v339, %v345
        %v363 = vmax.f32 %v347, 0.0
        %v364 = vmax.f32 %v348, 0.0
        %v365 = vmax.f32 %v349, 0.0
        %v366 = vmax.f32 %v350, 0.0
        %v367 = vmax.f32 %v351, 0.0
        %v368 = vmax.f32 %v352, 0.0
        %v369 = vmax.f32 %v353, 0.0
        %v370 = vmax.f32 %v354, 0.0
        %v371 = vmax.f32 %v355, 0.0
        %v372 = vmax.f32 %v356, 0.0
        %v373 = vmax.f32 %v357, 0.0
        %v374 = vmax.f32 %v358, 0.0
        %v375 = vmax.f32 %v359, 0.0
        %v376 = vmax.f32 %v360, 0.0
        %v377 = vmax.f32 %v361, 0.0
        %v378 = vmax.f32 %v362, 0.0
        %v379 = vpack.c.bf16 %v364, %v363
        %v380 = vpack.c.bf16 %v366, %v365
        %v381 = vpack.c.bf16 %v368, %v367
        %v382 = vpack.c.bf16 %v370, %v369
        %v383 = vpack.c.bf16 %v372, %v371
        %v384 = vpack.c.bf16 %v374, %v373
        %v385 = vpack.c.bf16 %v376, %v375
        %v386 = vpack.c.bf16 %v378, %v377
        %v387 = vld [vmem:[%s3] sm:$0xf]
        %v388 = vld [vmem:[%s3 + $0x4] sm:$0xf]
        %v389 = vld [vmem:[%s3 + $0x8] sm:$0xf]
        %v390 = vld [vmem:[%s3 + $0xc] sm:$0xf]
        %v391 = vld [vmem:[%s3 + $0x10] sm:$0xf]
        %v392 = vld [vmem:[%s3 + $0x14] sm:$0xf]
        %v393 = vld [vmem:[%s3 + $0x18] sm:$0xf]
        %v394 = vld [vmem:[%s3 + $0x1c] sm:$0xf]
        %v395 = vld [vmem:[%s3 + $0x20] sm:$0xf]
        %v396 = vld [vmem:[%s3 + $0x24] sm:$0xf]
        %v397 = vld [vmem:[%s3 + $0x28] sm:$0xf]
        %v398 = vld [vmem:[%s3 + $0x2c] sm:$0xf]
        %v399 = vld [vmem:[%s4] sm:$0x1]
        %v401 = vlaneseq
        %v402 = vshrl.u32 %v401, 7
        %v403 = vsub.s32 0, %v402
        %v404 = vrot.slane %v399, %v403
        %v418 = vunpack.c.l.b16 %v387
        %v419 = vunpack.c.l.b16 %v388
        %v420 = vunpack.c.l.b16 %v389
        %v421 = vunpack.c.l.b16 %v390
        %v422 = vunpack.c.l.b16 %v391
        %v423 = vunpack.c.l.b16 %v392
        %v424 = vunpack.c.l.b16 %v393
        %v425 = vunpack.c.l.b16 %v394
        %v426 = vunpack.c.l.b16 %v395
        %v427 = vunpack.c.l.b16 %v396
        %v428 = vunpack.c.l.b16 %v397
        %v429 = vunpack.c.l.b16 %v398
        %v430 = vpack.c.b16 %v419, %v418
        %v431 = vpack.c.b16 %v421, %v420
        %v432 = vpack.c.b16 %v423, %v422
        %v433 = vpack.c.b16 %v425, %v424
        %v434 = vpack.c.b16 %v427, %v426
        %v435 = vpack.c.b16 %v429, %v428
        %vm442 = vcmask 785408
        %v444 = vsel %vm442, %v379, 0
        %v447 = vsel %vm442, %v380, 0
        %v450 = vsel %vm442, %v381, 0
        %v453 = vsel %vm442, %v382, 0
        %v456 = vsel %vm442, %v383, 0
        %v459 = vsel %vm442, %v384, 0
        %v462 = vsel %vm442, %v385, 0
        %v465 = vsel %vm442, %v386, 0
        %467 = vmatprep.subr.bf16.mxu0 0
        %468 = vmatpush1.bf16.msra.mxu0 %v430
        %469 = vmatprep.subr.bf16.mxu0 0
        %470 = vmatpush1.bf16.msra.mxu0 %v431
        %471 = vmatprep.subr.bf16.mxu0 0
        %472 = vmatpush1.bf16.msra.mxu0 %v432
        %473 = vmatprep.subr.bf16.mxu0 0
        %474 = vmatpush1.bf16.msra.mxu0 %v433
        %475 = vmatprep.subr.bf16.mxu0 0
        %476 = vmatpush1.bf16.msra.mxu0 %v434
        %477 = vmatprep.subr.bf16.mxu0 0
        %478 = vmatpush1.bf16.msra.mxu0 %v435
        %479 = vmatprep.subr.bf16.mxu0 0
        %480 = vmatpush1.bf16.msra.mxu0 0
        %481 = vmatprep.subr.bf16.mxu0 0
        %482 = vmatpush1.bf16.msra.mxu0 0
        %483 = vmatprep.subr.bf16.mxu0 0
        %484 = vmatpush1.bf16.msra.mxu0 0
        %485 = vmatprep.subr.bf16.mxu0 0
        %486 = vmatpush1.bf16.msra.mxu0 0
        %487 = vmatprep.subr.bf16.mxu0 0
        %488 = vmatpush1.bf16.msra.mxu0 0
        %489 = vmatprep.subr.bf16.mxu0 0
        %490 = vmatpush1.bf16.msra.mxu0 0
        %491 = vmatprep.subr.bf16.mxu0 0
        %492 = vmatpush1.bf16.msra.mxu0 0
        %493 = vmatprep.subr.bf16.mxu0 0
        %494 = vmatpush1.bf16.msra.mxu0 0
        %495 = vmatprep.subr.bf16.mxu0 0
        %496 = vmatpush1.bf16.msra.mxu0 0
        %497 = vmatprep.subr.bf16.mxu0 0
        %498 = vmatpush1.bf16.msra.mxu0 0
        %499 = vmatprep.mubr.bf16.mxu0 0
        %500 = vmatmul.mubr.bf16.gmra.mrb[0].mxu0 %v444
        %v501 = vpop.f32.mrb[0].mxu0
        %v502 = vadd.f32 %v404, %v501
        %v503 = vpop.f32.mrb[0].mxu0
        %v504 = vpop.f32.mrb[0].mxu0
        %v505 = vadd.f32 %v404, %v504
        %v506 = vpop.f32.mrb[0].mxu0
        %507 = vmatprep.mubr.bf16.mxu0 0
        %508 = vmatmul.mubr.bf16.gmra.mrb[0].mxu0 %v447
        %v509 = vpop.f32.mrb[0].mxu0
        %v510 = vadd.f32 %v404, %v509
        %v511 = vpop.f32.mrb[0].mxu0
        %v512 = vpop.f32.mrb[0].mxu0
        %v513 = vadd.f32 %v404, %v512
        %v514 = vpop.f32.mrb[0].mxu0
        %515 = vmatprep.mubr.bf16.mxu0 0
        %516 = vmatmul.mubr.bf16.gmra.mrb[0].mxu0 %v450
        %v517 = vpop.f32.mrb[0].mxu0
        %v518 = vadd.f32 %v404, %v517
        %v519 = vpop.f32.mrb[0].mxu0
        %v520 = vpop.f32.mrb[0].mxu0
        %v521 = vadd.f32 %v404, %v520
        %v522 = vpop.f32.mrb[0].mxu0
        %523 = vmatprep.mubr.bf16.mxu0 0
        %524 = vmatmul.mubr.bf16.gmra.mrb[0].mxu0 %v453
        %v525 = vpop.f32.mrb[0].mxu0
        %v526 = vadd.f32 %v404, %v525
        %v527 = vpop.f32.mrb[0].mxu0
        %v528 = vpop.f32.mrb[0].mxu0
        %v529 = vadd.f32 %v404, %v528
        %v530 = vpop.f32.mrb[0].mxu0
        %531 = vmatprep.mubr.bf16.mxu0 0
        %532 = vmatmul.mubr.bf16.gmra.mrb[0].mxu0 %v456
        %v533 = vpop.f32.mrb[0].mxu0
        %v534 = vadd.f32 %v404, %v533
        %v535 = vpop.f32.mrb[0].mxu0
        %v536 = vpop.f32.mrb[0].mxu0
        %v537 = vadd.f32 %v404, %v536
        %v538 = vpop.f32.mrb[0].mxu0
        %539 = vmatprep.mubr.bf16.mxu0 0
        %540 = vmatmul.mubr.bf16.gmra.mrb[0].mxu0 %v459
        %v541 = vpop.f32.mrb[0].mxu0
        %v542 = vadd.f32 %v404, %v541
        %v543 = vpop.f32.mrb[0].mxu0
        %v544 = vpop.f32.mrb[0].mxu0
        %v545 = vadd.f32 %v404, %v544
        %v546 = vpop.f32.mrb[0].mxu0
        %547 = vmatprep.mubr.bf16.mxu0 0
        %548 = vmatmul.mubr.bf16.gmra.mrb[0].mxu0 %v462
        %v549 = vpop.f32.mrb[0].mxu0
        %v550 = vadd.f32 %v404, %v549
        %v551 = vpop.f32.mrb[0].mxu0
        %v552 = vpop.f32.mrb[0].mxu0
        %v553 = vadd.f32 %v404, %v552
        %v554 = vpop.f32.mrb[0].mxu0
        %555 = vmatprep.mubr.bf16.mxu0 0
        %556 = vmatmul.mubr.bf16.gmra.mrb[0].mxu0 %v465
        %v557 = vpop.f32.mrb[0].mxu0
        %v558 = vadd.f32 %v404, %v557
        %v559 = vpop.f32.mrb[0].mxu0
        %v560 = vpop.f32.mrb[0].mxu0
        %v561 = vadd.f32 %v404, %v560
        %v562 = vpop.f32.mrb[0].mxu0
        %563 = vdwg.mxu0
        %v564 = vmax.f32 %v502, 0.0
        %v565 = vmax.f32 %v505, 0.0
        %v566 = vmax.f32 %v510, 0.0
        %v567 = vmax.f32 %v513, 0.0
        %v568 = vmax.f32 %v518, 0.0
        %v569 = vmax.f32 %v521, 0.0
        %v570 = vmax.f32 %v526, 0.0
        %v571 = vmax.f32 %v529, 0.0
        %v572 = vmax.f32 %v534, 0.0
        %v573 = vmax.f32 %v537, 0.0
        %v574 = vmax.f32 %v542, 0.0
        %v575 = vmax.f32 %v545, 0.0
        %v576 = vmax.f32 %v550, 0.0
        %v577 = vmax.f32 %v553, 0.0
        %v578 = vmax.f32 %v558, 0.0
        %v579 = vmax.f32 %v561, 0.0
        %v580 = vpack.c.bf16 %v565, %v564
        %v581 = vpack.c.bf16 %v567, %v566
        %v582 = vpack.c.bf16 %v569, %v568
        %v583 = vpack.c.bf16 %v571, %v570
        %v584 = vpack.c.bf16 %v573, %v572
        %v585 = vpack.c.bf16 %v575, %v574
        %v586 = vpack.c.bf16 %v577, %v576
        %v587 = vpack.c.bf16 %v579, %v578
        %v588 = vld [vmem:[%s5] sm:$0xf]
        %v589 = vld [vmem:[%s5 + $0x4] sm:$0xf]
        %v590 = vld [vmem:[%s5 + $0x8] sm:$0xf]
        %v591 = vld [vmem:[%s5 + $0xc] sm:$0xf]
        %v592 = vld [vmem:[%s5 + $0x10] sm:$0xf]
        %v593 = vld [vmem:[%s5 + $0x14] sm:$0xf]
        %v594 = vld [vmem:[%s5 + $0x18] sm:$0xf]
        %v595 = vld [vmem:[%s5 + $0x1c] sm:$0xf]
        %v596 = vld [vmem:[%s5 + $0x20] sm:$0xf]
        %v597 = vld [vmem:[%s5 + $0x24] sm:$0xf]
        %v598 = vld [vmem:[%s5 + $0x28] sm:$0xf]
        %v599 = vld [vmem:[%s5 + $0x2c] sm:$0xf]
        %v600 = vld [vmem:[%s5 + $0x30] sm:$0xf]
        %v601 = vld [vmem:[%s5 + $0x34] sm:$0xf]
        %v602 = vld [vmem:[%s5 + $0x38] sm:$0xf]
        %v603 = vld [vmem:[%s5 + $0x3c] sm:$0xf]
        %v620 = vunpack.c.l.b16 %v588
        %v621 = vunpack.c.l.b16 %v589
        %v622 = vunpack.c.l.b16 %v590
        %v623 = vunpack.c.l.b16 %v591
        %v624 = vunpack.c.l.b16 %v592
        %v625 = vunpack.c.l.b16 %v593
        %v626 = vunpack.c.l.b16 %v594
        %v627 = vunpack.c.l.b16 %v595
        %v628 = vunpack.c.l.b16 %v596
        %v629 = vunpack.c.l.b16 %v597
        %v630 = vunpack.c.l.b16 %v598
        %v631 = vunpack.c.l.b16 %v599
        %v632 = vunpack.c.l.b16 %v600
        %v633 = vunpack.c.l.b16 %v601
        %v634 = vunpack.c.l.b16 %v602
        %v635 = vunpack.c.l.b16 %v603
        %v636 = vpack.c.b16 %v621, %v620
        %v637 = vpack.c.b16 %v623, %v622
        %v638 = vpack.c.b16 %v625, %v624
        %v639 = vpack.c.b16 %v627, %v626
        %v640 = vpack.c.b16 %v629, %v628
        %v641 = vpack.c.b16 %v631, %v630
        %v642 = vpack.c.b16 %v633, %v632
        %v643 = vpack.c.b16 %v635, %v634
        %652 = vmatprep.subr.bf16.mxu0 0
        %653 = vmatpush1.bf16.msra.mxu0 %v636
        %654 = vmatprep.subr.bf16.mxu0 0
        %655 = vmatpush1.bf16.msra.mxu0 %v637
        %656 = vmatprep.subr.bf16.mxu0 0
        %657 = vmatpush1.bf16.msra.mxu0 %v638
        %658 = vmatprep.subr.bf16.mxu0 0
        %659 = vmatpush1.bf16.msra.mxu0 %v639
        %660 = vmatprep.subr.bf16.mxu0 0
        %661 = vmatpush1.bf16.msra.mxu0 %v640
        %662 = vmatprep.subr.bf16.mxu0 0
        %663 = vmatpush1.bf16.msra.mxu0 %v641
        %664 = vmatprep.subr.bf16.mxu0 0
        %665 = vmatpush1.bf16.msra.mxu0 %v642
        %666 = vmatprep.subr.bf16.mxu0 0
        %667 = vmatpush1.bf16.msra.mxu0 %v643
        %668 = vmatprep.subr.bf16.mxu0 0
        %669 = vmatpush1.bf16.msra.mxu0 0
        %670 = vmatprep.subr.bf16.mxu0 0
        %671 = vmatpush1.bf16.msra.mxu0 0
        %672 = vmatprep.subr.bf16.mxu0 0
        %673 = vmatpush1.bf16.msra.mxu0 0
        %674 = vmatprep.subr.bf16.mxu0 0
        %675 = vmatpush1.bf16.msra.mxu0 0
        %676 = vmatprep.subr.bf16.mxu0 0
        %677 = vmatpush1.bf16.msra.mxu0 0
        %678 = vmatprep.subr.bf16.mxu0 0
        %679 = vmatpush1.bf16.msra.mxu0 0
        %680 = vmatprep.subr.bf16.mxu0 0
        %681 = vmatpush1.bf16.msra.mxu0 0
        %682 = vmatprep.subr.bf16.mxu0 0
        %683 = vmatpush1.bf16.msra.mxu0 0
        %684 = vmatprep.mubr.bf16.mxu0 0
        %685 = vmatmul.mubr.bf16.gmra.mrb[0].mxu0 %v580
        %v686 = vpop.f32.mrb[0].mxu0
        %v687 = vadd.f32 0.0, %v686
        %v688 = vpop.f32.mrb[0].mxu0
        %v689 = vpop.f32.mrb[0].mxu0
        %v690 = vadd.f32 0.0, %v689
        %v691 = vpop.f32.mrb[0].mxu0
        %692 = vmatprep.mubr.bf16.mxu0 0
        %693 = vmatmul.mubr.bf16.gmra.mrb[0].mxu0 %v581
        %v694 = vpop.f32.mrb[0].mxu0
        %v695 = vadd.f32 0.0, %v694
        %v696 = vpop.f32.mrb[0].mxu0
        %v697 = vpop.f32.mrb[0].mxu0
        %v698 = vadd.f32 0.0, %v697
        %v699 = vpop.f32.mrb[0].mxu0
        %700 = vmatprep.mubr.bf16.mxu0 0
        %701 = vmatmul.mubr.bf16.gmra.mrb[0].mxu0 %v582
        %v702 = vpop.f32.mrb[0].mxu0
        %v703 = vadd.f32 0.0, %v702
        %v704 = vpop.f32.mrb[0].mxu0
        %v705 = vpop.f32.mrb[0].mxu0
        %v706 = vadd.f32 0.0, %v705
        %v707 = vpop.f32.mrb[0].mxu0
        %708 = vmatprep.mubr.bf16.mxu0 0
        %709 = vmatmul.mubr.bf16.gmra.mrb[0].mxu0 %v583
        %v710 = vpop.f32.mrb[0].mxu0
        %v711 = vadd.f32 0.0, %v710
        %v712 = vpop.f32.mrb[0].mxu0
        %v713 = vpop.f32.mrb[0].mxu0
        %v714 = vadd.f32 0.0, %v713
        %v715 = vpop.f32.mrb[0].mxu0
        %716 = vmatprep.mubr.bf16.mxu0 0
        %717 = vmatmul.mubr.bf16.gmra.mrb[0].mxu0 %v584
        %v718 = vpop.f32.mrb[0].mxu0
        %v719 = vadd.f32 0.0, %v718
        %v720 = vpop.f32.mrb[0].mxu0
        %v721 = vpop.f32.mrb[0].mxu0
        %v722 = vadd.f32 0.0, %v721
        %v723 = vpop.f32.mrb[0].mxu0
        %724 = vmatprep.mubr.bf16.mxu0 0
        %725 = vmatmul.mubr.bf16.gmra.mrb[0].mxu0 %v585
        %v726 = vpop.f32.mrb[0].mxu0
        %v727 = vadd.f32 0.0, %v726
        %v728 = vpop.f32.mrb[0].mxu0
        %v729 = vpop.f32.mrb[0].mxu0
        %v730 = vadd.f32 0.0, %v729
        %v731 = vpop.f32.mrb[0].mxu0
        %732 = vmatprep.mubr.bf16.mxu0 0
        %733 = vmatmul.mubr.bf16.gmra.mrb[0].mxu0 %v586
        %v734 = vpop.f32.mrb[0].mxu0
        %v735 = vadd.f32 0.0, %v734
        %v736 = vpop.f32.mrb[0].mxu0
        %v737 = vpop.f32.mrb[0].mxu0
        %v738 = vadd.f32 0.0, %v737
        %v739 = vpop.f32.mrb[0].mxu0
        %740 = vmatprep.mubr.bf16.mxu0 0
        %741 = vmatmul.mubr.bf16.gmra.mrb[0].mxu0 %v587
        %v742 = vpop.f32.mrb[0].mxu0
        %v743 = vadd.f32 0.0, %v742
        %v744 = vpop.f32.mrb[0].mxu0
        %v745 = vpop.f32.mrb[0].mxu0
        %v746 = vadd.f32 0.0, %v745
        %v747 = vpop.f32.mrb[0].mxu0
        %748 = vdwg.mxu0
        %v749 = vrot.slane %v687, 7
        %v750 = vrot.slane %v690, 7
        %v751 = vrot.slane %v695, 7
        %v752 = vrot.slane %v698, 7
        %v753 = vrot.slane %v703, 7
        %v754 = vrot.slane %v706, 7
        %v755 = vrot.slane %v711, 7
        %v756 = vrot.slane %v714, 7
        %v757 = vrot.slane %v719, 7
        %v758 = vrot.slane %v722, 7
        %v759 = vrot.slane %v727, 7
        %v760 = vrot.slane %v730, 7
        %v761 = vrot.slane %v735, 7
        %v762 = vrot.slane %v738, 7
        %v763 = vrot.slane %v743, 7
        %v764 = vrot.slane %v746, 7
        %v765 = vlaneseq
        %v766 = vshrl.u32 %v765, 7
        %vm767 = vcmp.lt.s32.totalorder %v766, 1
        %v768 = vsel %vm767, %v763, %v764
        %v769 = vsel %vm767, %v762, %v763
        %v770 = vsel %vm767, %v761, %v762
        %v771 = vsel %vm767, %v760, %v761
        %v772 = vsel %vm767, %v759, %v760
        %v773 = vsel %vm767, %v758, %v759
        %v774 = vsel %vm767, %v757, %v758
        %v775 = vsel %vm767, %v756, %v757
        %v776 = vsel %vm767, %v755, %v756
        %v777 = vsel %vm767, %v754, %v755
        %v778 = vsel %vm767, %v753, %v754
        %v779 = vsel %vm767, %v752, %v753
        %v780 = vsel %vm767, %v751, %v752
        %v781 = vsel %vm767, %v750, %v751
        %v782 = vsel %vm767, %v749, %v750
        %v783 = vsel %vm767, %v764, %v749
        %800 = vrot.lane.b32.xlu0 %v687, 64
        %v801 = vpop.permute.xlu0 %800
        %802 = vrot.lane.b32.xlu0 %v690, 64
        %v803 = vpop.permute.xlu0 %802
        %804 = vrot.lane.b32.xlu0 %v695, 64
        %v805 = vpop.permute.xlu0 %804
        %806 = vrot.lane.b32.xlu0 %v698, 64
        %v807 = vpop.permute.xlu0 %806
        %808 = vrot.lane.b32.xlu0 %v703, 64
        %v809 = vpop.permute.xlu0 %808
        %810 = vrot.lane.b32.xlu0 %v706, 64
        %v811 = vpop.permute.xlu0 %810
        %812 = vrot.lane.b32.xlu0 %v711, 64
        %v813 = vpop.permute.xlu0 %812
        %814 = vrot.lane.b32.xlu0 %v714, 64
        %v815 = vpop.permute.xlu0 %814
        %816 = vrot.lane.b32.xlu0 %v719, 64
        %v817 = vpop.permute.xlu0 %816
        %818 = vrot.lane.b32.xlu0 %v722, 64
        %v819 = vpop.permute.xlu0 %818
        %820 = vrot.lane.b32.xlu0 %v727, 64
        %v821 = vpop.permute.xlu0 %820
        %822 = vrot.lane.b32.xlu0 %v730, 64
        %v823 = vpop.permute.xlu0 %822
        %824 = vrot.lane.b32.xlu0 %v735, 64
        %v825 = vpop.permute.xlu0 %824
        %826 = vrot.lane.b32.xlu0 %v738, 64
        %v827 = vpop.permute.xlu0 %826
        %828 = vrot.lane.b32.xlu0 %v743, 64
        %v829 = vpop.permute.xlu0 %828
        %830 = vrot.lane.b32.xlu0 %v746, 64
        %v831 = vpop.permute.xlu0 %830
        %v848 = vrot.slane %v801, 1
        %v849 = vrot.slane %v803, 1
        %v850 = vrot.slane %v805, 1
        %v851 = vrot.slane %v807, 1
        %v852 = vrot.slane %v809, 1
        %v853 = vrot.slane %v811, 1
        %v854 = vrot.slane %v813, 1
        %v855 = vrot.slane %v815, 1
        %v856 = vrot.slane %v817, 1
        %v857 = vrot.slane %v819, 1
        %v858 = vrot.slane %v821, 1
        %v859 = vrot.slane %v823, 1
        %v860 = vrot.slane %v825, 1
        %v861 = vrot.slane %v827, 1
        %v862 = vrot.slane %v829, 1
        %v863 = vrot.slane %v831, 1
        %vm864 = vcmp.lt.s32.totalorder %v766, 7
        %v865 = vsel %vm864, %v862, %v863
        %v866 = vsel %vm864, %v861, %v862
        %v867 = vsel %vm864, %v860, %v861
        %v868 = vsel %vm864, %v859, %v860
        %v869 = vsel %vm864, %v858, %v859
        %v870 = vsel %vm864, %v857, %v858
        %v871 = vsel %vm864, %v856, %v857
        %v872 = vsel %vm864, %v855, %v856
        %v873 = vsel %vm864, %v854, %v855
        %v874 = vsel %vm864, %v853, %v854
        %v875 = vsel %vm864, %v852, %v853
        %v876 = vsel %vm864, %v851, %v852
        %v877 = vsel %vm864, %v850, %v851
        %v878 = vsel %vm864, %v849, %v850
        %v879 = vsel %vm864, %v848, %v849
        %v880 = vsel %vm864, %v863, %v848
        %v881 = vadd.s32 %v766, 8
        %v882 = vadd.s32 %v766, 16
        %v883 = vadd.s32 %v766, 24
        %v884 = vadd.s32 %v766, 32
        %v885 = vadd.s32 %v766, 40
        %v886 = vadd.s32 %v766, 48
        %v887 = vadd.s32 %v766, 56
        %v888 = vadd.s32 %v766, 64
        %v889 = vadd.s32 %v766, 72
        %v890 = vadd.s32 %v766, 80
        %v891 = vadd.s32 %v766, 88
        %v892 = vadd.s32 %v766, 96
        %v893 = vadd.s32 %v766, 104
        %v894 = vadd.s32 %v766, 112
        %v895 = vadd.s32 %v766, 120
        %vm896 = vcmp.lt.s32.totalorder %v766, 0
        %v897 = vsub.s32 0, %v766
        %v898 = vsel %vm896, %v897, %v766
        %v899 = vshrl.u32 %v898, 6
        %v900 = vand.u32 %v898, 63
        %v901 = vsub.s32 0, %v900
        %v902 = vsel %vm896, %v901, %v900
        %vm903 = vcmp.lt.s32.totalorder %v881, 0
        %v904 = vsub.s32 0, %v881
        %v905 = vsel %vm903, %v904, %v881
        %v906 = vshrl.u32 %v905, 6
        %v907 = vand.u32 %v905, 63
        %v908 = vsub.s32 0, %v907
        %v909 = vsel %vm903, %v908, %v907
        %vm910 = vcmp.lt.s32.totalorder %v882, 0
        %v911 = vsub.s32 0, %v882
        %v912 = vsel %vm910, %v911, %v882
        %v913 = vshrl.u32 %v912, 6
        %v914 = vand.u32 %v912, 63
        %v915 = vsub.s32 0, %v914
        %v916 = vsel %vm910, %v915, %v914
        %vm917 = vcmp.lt.s32.totalorder %v883, 0
        %v918 = vsub.s32 0, %v883
        %v919 = vsel %vm917, %v918, %v883
        %v920 = vshrl.u32 %v919, 6
        %v921 = vand.u32 %v919, 63
        %v922 = vsub.s32 0, %v921
        %v923 = vsel %vm917, %v922, %v921
        %vm924 = vcmp.lt.s32.totalorder %v884, 0
        %v925 = vsub.s32 0, %v884
        %v926 = vsel %vm924, %v925, %v884
        %v927 = vshrl.u32 %v926, 6
        %v928 = vand.u32 %v926, 63
        %v929 = vsub.s32 0, %v928
        %v930 = vsel %vm924, %v929, %v928
        %vm931 = vcmp.lt.s32.totalorder %v885, 0
        %v932 = vsub.s32 0, %v885
        %v933 = vsel %vm931, %v932, %v885
        %v934 = vshrl.u32 %v933, 6
        %v935 = vand.u32 %v933, 63
        %v936 = vsub.s32 0, %v935
        %v937 = vsel %vm931, %v936, %v935
        %vm938 = vcmp.lt.s32.totalorder %v886, 0
        %v939 = vsub.s32 0, %v886
        %v940 = vsel %vm938, %v939, %v886
        %v941 = vshrl.u32 %v940, 6
        %v942 = vand.u32 %v940, 63
        %v943 = vsub.s32 0, %v942
        %v944 = vsel %vm938, %v943, %v942
        %vm945 = vcmp.lt.s32.totalorder %v887, 0
        %v946 = vsub.s32 0, %v887
        %v947 = vsel %vm945, %v946, %v887
        %v948 = vshrl.u32 %v947, 6
        %v949 = vand.u32 %v947, 63
        %v950 = vsub.s32 0, %v949
        %v951 = vsel %vm945, %v950, %v949
        %vm952 = vcmp.lt.s32.totalorder %v888, 0
        %v953 = vsub.s32 0, %v888
        %v954 = vsel %vm952, %v953, %v888
        %v955 = vshrl.u32 %v954, 6
        %v956 = vand.u32 %v954, 63
        %v957 = vsub.s32 0, %v956
        %v958 = vsel %vm952, %v957, %v956
        %vm959 = vcmp.lt.s32.totalorder %v889, 0
        %v960 = vsub.s32 0, %v889
        %v961 = vsel %vm959, %v960, %v889
        %v962 = vshrl.u32 %v961, 6
        %v963 = vand.u32 %v961, 63
        %v964 = vsub.s32 0, %v963
        %v965 = vsel %vm959, %v964, %v963
        %vm966 = vcmp.lt.s32.totalorder %v890, 0
        %v967 = vsub.s32 0, %v890
        %v968 = vsel %vm966, %v967, %v890
        %v969 = vshrl.u32 %v968, 6
        %v970 = vand.u32 %v968, 63
        %v971 = vsub.s32 0, %v970
        %v972 = vsel %vm966, %v971, %v970
        %vm973 = vcmp.lt.s32.totalorder %v891, 0
        %v974 = vsub.s32 0, %v891
        %v975 = vsel %vm973, %v974, %v891
        %v976 = vshrl.u32 %v975, 6
        %v977 = vand.u32 %v975, 63
        %v978 = vsub.s32 0, %v977
        %v979 = vsel %vm973, %v978, %v977
        %vm980 = vcmp.lt.s32.totalorder %v892, 0
        %v981 = vsub.s32 0, %v892
        %v982 = vsel %vm980, %v981, %v892
        %v983 = vshrl.u32 %v982, 6
        %v984 = vand.u32 %v982, 63
        %v985 = vsub.s32 0, %v984
        %v986 = vsel %vm980, %v985, %v984
        %vm987 = vcmp.lt.s32.totalorder %v893, 0
        %v988 = vsub.s32 0, %v893
        %v989 = vsel %vm987, %v988, %v893
        %v990 = vshrl.u32 %v989, 6
        %v991 = vand.u32 %v989, 63
        %v992 = vsub.s32 0, %v991
        %v993 = vsel %vm987, %v992, %v991
        %vm994 = vcmp.lt.s32.totalorder %v894, 0
        %v995 = vsub.s32 0, %v894
        %v996 = vsel %vm994, %v995, %v894
        %v997 = vshrl.u32 %v996, 6
        %v998 = vand.u32 %v996, 63
        %v999 = vsub.s32 0, %v998
        %v1000 = vsel %vm994, %v999, %v998
        %vm1001 = vcmp.lt.s32.totalorder %v895, 0
        %v1002 = vsub.s32 0, %v895
        %v1003 = vsel %vm1001, %v1002, %v895
        %v1004 = vshrl.u32 %v1003, 6
        %v1005 = vand.u32 %v1003, 63
        %v1006 = vsub.s32 0, %v1005
        %v1007 = vsel %vm1001, %v1006, %v1005
        %vm1008 = vcmp.ne.s32.totalorder %v902, 0
        %vm1009 = vcmp.ne.s32.totalorder %v909, 0
        %vm1010 = vcmp.ne.s32.totalorder %v916, 0
        %vm1011 = vcmp.ne.s32.totalorder %v923, 0
        %vm1012 = vcmp.ne.s32.totalorder %v930, 0
        %vm1013 = vcmp.ne.s32.totalorder %v937, 0
        %vm1014 = vcmp.ne.s32.totalorder %v944, 0
        %vm1015 = vcmp.ne.s32.totalorder %v951, 0
        %vm1016 = vcmp.ne.s32.totalorder %v958, 0
        %vm1017 = vcmp.ne.s32.totalorder %v965, 0
        %vm1018 = vcmp.ne.s32.totalorder %v972, 0
        %vm1019 = vcmp.ne.s32.totalorder %v979, 0
        %vm1020 = vcmp.ne.s32.totalorder %v986, 0
        %vm1021 = vcmp.ne.s32.totalorder %v993, 0
        %vm1022 = vcmp.ne.s32.totalorder %v1000, 0
        %vm1023 = vcmp.ne.s32.totalorder %v1007, 0
        %vm1024 = vcmp.lt.s32.totalorder %v902, 0
        %vm1025 = vcmp.lt.s32.totalorder %v909, 0
        %vm1026 = vcmp.lt.s32.totalorder %v916, 0
        %vm1027 = vcmp.lt.s32.totalorder %v923, 0
        %vm1028 = vcmp.lt.s32.totalorder %v930, 0
        %vm1029 = vcmp.lt.s32.totalorder %v937, 0
        %vm1030 = vcmp.lt.s32.totalorder %v944, 0
        %vm1031 = vcmp.lt.s32.totalorder %v951, 0
        %vm1032 = vcmp.lt.s32.totalorder %v958, 0
        %vm1033 = vcmp.lt.s32.totalorder %v965, 0
        %vm1034 = vcmp.lt.s32.totalorder %v972, 0
        %vm1035 = vcmp.lt.s32.totalorder %v979, 0
        %vm1036 = vcmp.lt.s32.totalorder %v986, 0
        %vm1037 = vcmp.lt.s32.totalorder %v993, 0
        %vm1038 = vcmp.lt.s32.totalorder %v1000, 0
        %vm1039 = vcmp.lt.s32.totalorder %v1007, 0
        %vm1040 = vmand %vm1024, %vm1008
        %vm1041 = vmand %vm1025, %vm1009
        %vm1042 = vmand %vm1026, %vm1010
        %vm1043 = vmand %vm1027, %vm1011
        %vm1044 = vmand %vm1028, %vm1012
        %vm1045 = vmand %vm1029, %vm1013
        %vm1046 = vmand %vm1030, %vm1014
        %vm1047 = vmand %vm1031, %vm1015
        %vm1048 = vmand %vm1032, %vm1016
        %vm1049 = vmand %vm1033, %vm1017
        %vm1050 = vmand %vm1034, %vm1018
        %vm1051 = vmand %vm1035, %vm1019
        %vm1052 = vmand %vm1036, %vm1020
        %vm1053 = vmand %vm1037, %vm1021
        %vm1054 = vmand %vm1038, %vm1022
        %vm1055 = vmand %vm1039, %vm1023
        %v1056 = vadd.s32 %v902, 64
        %v1057 = vadd.s32 %v909, 64
        %v1058 = vadd.s32 %v916, 64
        %v1059 = vadd.s32 %v923, 64
        %v1060 = vadd.s32 %v930, 64
        %v1061 = vadd.s32 %v937, 64
        %v1062 = vadd.s32 %v944, 64
        %v1063 = vadd.s32 %v951, 64
        %v1064 = vadd.s32 %v958, 64
        %v1065 = vadd.s32 %v965, 64
        %v1066 = vadd.s32 %v972, 64
        %v1067 = vadd.s32 %v979, 64
        %v1068 = vadd.s32 %v986, 64
        %v1069 = vadd.s32 %v993, 64
        %v1070 = vadd.s32 %v1000, 64
        %v1071 = vadd.s32 %v1007, 64
        %v1072 = vsel %vm1040, %v1056, %v902
        %v1073 = vsel %vm1041, %v1057, %v909
        %v1074 = vsel %vm1042, %v1058, %v916
        %v1075 = vsel %vm1043, %v1059, %v923
        %v1076 = vsel %vm1044, %v1060, %v930
        %v1077 = vsel %vm1045, %v1061, %v937
        %v1078 = vsel %vm1046, %v1062, %v944
        %v1079 = vsel %vm1047, %v1063, %v951
        %v1080 = vsel %vm1048, %v1064, %v958
        %v1081 = vsel %vm1049, %v1065, %v965
        %v1082 = vsel %vm1050, %v1066, %v972
        %v1083 = vsel %vm1051, %v1067, %v979
        %v1084 = vsel %vm1052, %v1068, %v986
        %v1085 = vsel %vm1053, %v1069, %v993
        %v1086 = vsel %vm1054, %v1070, %v1000
        %v1087 = vsel %vm1055, %v1071, %v1007
        %vm1088 = vcmp.eq.s32.totalorder %v1072, 0
        %vm1089 = vcmp.eq.s32.totalorder %v1073, 0
        %vm1090 = vcmp.eq.s32.totalorder %v1074, 0
        %vm1091 = vcmp.eq.s32.totalorder %v1075, 0
        %vm1092 = vcmp.eq.s32.totalorder %v1076, 0
        %vm1093 = vcmp.eq.s32.totalorder %v1077, 0
        %vm1094 = vcmp.eq.s32.totalorder %v1078, 0
        %vm1095 = vcmp.eq.s32.totalorder %v1079, 0
        %vm1096 = vcmp.eq.s32.totalorder %v1080, 0
        %vm1097 = vcmp.eq.s32.totalorder %v1081, 0
        %vm1098 = vcmp.eq.s32.totalorder %v1082, 0
        %vm1099 = vcmp.eq.s32.totalorder %v1083, 0
        %vm1100 = vcmp.eq.s32.totalorder %v1084, 0
        %vm1101 = vcmp.eq.s32.totalorder %v1085, 0
        %vm1102 = vcmp.eq.s32.totalorder %v1086, 0
        %vm1103 = vcmp.eq.s32.totalorder %v1087, 0
        %v1104 = vsel %vm1088, 0.0, %v783
        %v1105 = vsel %vm1089, 0.0, %v782
        %v1106 = vsel %vm1090, 0.0, %v781
        %v1107 = vsel %vm1091, 0.0, %v780
        %v1108 = vsel %vm1092, 0.0, %v779
        %v1109 = vsel %vm1093, 0.0, %v778
        %v1110 = vsel %vm1094, 0.0, %v777
        %v1111 = vsel %vm1095, 0.0, %v776
        %v1112 = vsel %vm1096, 0.0, %v775
        %v1113 = vsel %vm1097, 0.0, %v774
        %v1114 = vsel %vm1098, 0.0, %v773
        %v1115 = vsel %vm1099, 0.0, %v772
        %v1116 = vsel %vm1100, 0.0, %v771
        %v1117 = vsel %vm1101, 0.0, %v770
        %v1118 = vsel %vm1102, 0.0, %v769
        %v1119 = vsel %vm1103, 0.0, %v768
        %1120 = vrot.lane.b32.xlu0 %v687, 96
        %v1121 = vpop.permute.xlu0 %1120
        %1122 = vrot.lane.b32.xlu0 %v690, 96
        %v1123 = vpop.permute.xlu0 %1122
        %1124 = vrot.lane.b32.xlu0 %v695, 96
        %v1125 = vpop.permute.xlu0 %1124
        %1126 = vrot.lane.b32.xlu0 %v698, 96
        %v1127 = vpop.permute.xlu0 %1126
        %1128 = vrot.lane.b32.xlu0 %v703, 96
        %v1129 = vpop.permute.xlu0 %1128
        %1130 = vrot.lane.b32.xlu0 %v706, 96
        %v1131 = vpop.permute.xlu0 %1130
        %1132 = vrot.lane.b32.xlu0 %v711, 96
        %v1133 = vpop.permute.xlu0 %1132
        %1134 = vrot.lane.b32.xlu0 %v714, 96
        %v1135 = vpop.permute.xlu0 %1134
        %1136 = vrot.lane.b32.xlu0 %v719, 96
        %v1137 = vpop.permute.xlu0 %1136
        %1138 = vrot.lane.b32.xlu0 %v722, 96
        %v1139 = vpop.permute.xlu0 %1138
        %1140 = vrot.lane.b32.xlu0 %v727, 96
        %v1141 = vpop.permute.xlu0 %1140
        %1142 = vrot.lane.b32.xlu0 %v730, 96
        %v1143 = vpop.permute.xlu0 %1142
        %1144 = vrot.lane.b32.xlu0 %v735, 96
        %v1145 = vpop.permute.xlu0 %1144
        %1146 = vrot.lane.b32.xlu0 %v738, 96
        %v1147 = vpop.permute.xlu0 %1146
        %1148 = vrot.lane.b32.xlu0 %v743, 96
        %v1149 = vpop.permute.xlu0 %1148
        %1150 = vrot.lane.b32.xlu0 %v746, 96
        %v1151 = vpop.permute.xlu0 %1150
        %v1168 = vadd.f32 %v1104, %v1121
        %v1169 = vadd.f32 %v1105, %v1123
        %v1170 = vadd.f32 %v1106, %v1125
        %v1171 = vadd.f32 %v1107, %v1127
        %v1172 = vadd.f32 %v1108, %v1129
        %v1173 = vadd.f32 %v1109, %v1131
        %v1174 = vadd.f32 %v1110, %v1133
        %v1175 = vadd.f32 %v1111, %v1135
        %v1176 = vadd.f32 %v1112, %v1137
        %v1177 = vadd.f32 %v1113, %v1139
        %v1178 = vadd.f32 %v1114, %v1141
        %v1179 = vadd.f32 %v1115, %v1143
        %v1180 = vadd.f32 %v1116, %v1145
        %v1181 = vadd.f32 %v1117, %v1147
        %v1182 = vadd.f32 %v1118, %v1149
        %v1183 = vadd.f32 %v1119, %v1151
        %vm1184 = vcmp.eq.s32.totalorder %v1072, 63
        %vm1185 = vcmp.eq.s32.totalorder %v1073, 63
        %vm1186 = vcmp.eq.s32.totalorder %v1074, 63
        %vm1187 = vcmp.eq.s32.totalorder %v1075, 63
        %vm1188 = vcmp.eq.s32.totalorder %v1076, 63
        %vm1189 = vcmp.eq.s32.totalorder %v1077, 63
        %vm1190 = vcmp.eq.s32.totalorder %v1078, 63
        %vm1191 = vcmp.eq.s32.totalorder %v1079, 63
        %vm1192 = vcmp.eq.s32.totalorder %v1080, 63
        %vm1193 = vcmp.eq.s32.totalorder %v1081, 63
        %vm1194 = vcmp.eq.s32.totalorder %v1082, 63
        %vm1195 = vcmp.eq.s32.totalorder %v1083, 63
        %vm1196 = vcmp.eq.s32.totalorder %v1084, 63
        %vm1197 = vcmp.eq.s32.totalorder %v1085, 63
        %vm1198 = vcmp.eq.s32.totalorder %v1086, 63
        %vm1199 = vcmp.eq.s32.totalorder %v1087, 63
        %v1200 = vsel %vm1184, 0.0, %v879
        %v1201 = vsel %vm1185, 0.0, %v878
        %v1202 = vsel %vm1186, 0.0, %v877
        %v1203 = vsel %vm1187, 0.0, %v876
        %v1204 = vsel %vm1188, 0.0, %v875
        %v1205 = vsel %vm1189, 0.0, %v874
        %v1206 = vsel %vm1190, 0.0, %v873
        %v1207 = vsel %vm1191, 0.0, %v872
        %v1208 = vsel %vm1192, 0.0, %v871
        %v1209 = vsel %vm1193, 0.0, %v870
        %v1210 = vsel %vm1194, 0.0, %v869
        %v1211 = vsel %vm1195, 0.0, %v868
        %v1212 = vsel %vm1196, 0.0, %v867
        %v1213 = vsel %vm1197, 0.0, %v866
        %v1214 = vsel %vm1198, 0.0, %v865
        %v1215 = vsel %vm1199, 0.0, %v880
        %v1216 = vadd.f32 %v1168, %v1200
        %v1217 = vadd.f32 %v1169, %v1201
        %v1218 = vadd.f32 %v1170, %v1202
        %v1219 = vadd.f32 %v1171, %v1203
        %v1220 = vadd.f32 %v1172, %v1204
        %v1221 = vadd.f32 %v1173, %v1205
        %v1222 = vadd.f32 %v1174, %v1206
        %v1223 = vadd.f32 %v1175, %v1207
        %v1224 = vadd.f32 %v1176, %v1208
        %v1225 = vadd.f32 %v1177, %v1209
        %v1226 = vadd.f32 %v1178, %v1210
        %v1227 = vadd.f32 %v1179, %v1211
        %v1228 = vadd.f32 %v1180, %v1212
        %v1229 = vadd.f32 %v1181, %v1213
        %v1230 = vadd.f32 %v1182, %v1214
        %v1231 = vadd.f32 %v1183, %v1215
        %v1232 = vld [vmem:[%s6] sm:$0x1]
        %v1234 = vlaneseq
        %v1235 = vshrl.u32 %v1234, 7
        %v1236 = vsub.s32 0, %v1235
        %v1237 = vrot.slane %v1232, %v1236
        %v1239 = vadd.f32 %v1216, %v1237
        %v1240 = vadd.f32 %v1217, %v1237
        %v1241 = vadd.f32 %v1218, %v1237
        %v1242 = vadd.f32 %v1219, %v1237
        %v1243 = vadd.f32 %v1220, %v1237
        %v1244 = vadd.f32 %v1221, %v1237
        %v1245 = vadd.f32 %v1222, %v1237
        %v1246 = vadd.f32 %v1223, %v1237
        %v1247 = vadd.f32 %v1224, %v1237
        %v1248 = vadd.f32 %v1225, %v1237
        %v1249 = vadd.f32 %v1226, %v1237
        %v1250 = vadd.f32 %v1227, %v1237
        %v1251 = vadd.f32 %v1228, %v1237
        %v1252 = vadd.f32 %v1229, %v1237
        %v1253 = vadd.f32 %v1230, %v1237
        %v1254 = vadd.f32 %v1231, %v1237
        %1271 = vrot.lane.b32.xlu0 %v1239, 96
        %v1272 = vpop.permute.xlu0 %1271
        %1273 = vrot.lane.b32.xlu0 %v1240, 96
        %v1274 = vpop.permute.xlu0 %1273
        %1275 = vrot.lane.b32.xlu0 %v1241, 96
        %v1276 = vpop.permute.xlu0 %1275
        %1277 = vrot.lane.b32.xlu0 %v1242, 96
        %v1278 = vpop.permute.xlu0 %1277
        %1279 = vrot.lane.b32.xlu0 %v1243, 96
        %v1280 = vpop.permute.xlu0 %1279
        %1281 = vrot.lane.b32.xlu0 %v1244, 96
        %v1282 = vpop.permute.xlu0 %1281
        %1283 = vrot.lane.b32.xlu0 %v1245, 96
        %v1284 = vpop.permute.xlu0 %1283
        %1285 = vrot.lane.b32.xlu0 %v1246, 96
        %v1286 = vpop.permute.xlu0 %1285
        %1287 = vrot.lane.b32.xlu0 %v1247, 96
        %v1288 = vpop.permute.xlu0 %1287
        %1289 = vrot.lane.b32.xlu0 %v1248, 96
        %v1290 = vpop.permute.xlu0 %1289
        %1291 = vrot.lane.b32.xlu0 %v1249, 96
        %v1292 = vpop.permute.xlu0 %1291
        %1293 = vrot.lane.b32.xlu0 %v1250, 96
        %v1294 = vpop.permute.xlu0 %1293
        %1295 = vrot.lane.b32.xlu0 %v1251, 96
        %v1296 = vpop.permute.xlu0 %1295
        %1297 = vrot.lane.b32.xlu0 %v1252, 96
        %v1298 = vpop.permute.xlu0 %1297
        %1299 = vrot.lane.b32.xlu0 %v1253, 96
        %v1300 = vpop.permute.xlu0 %1299
        %1301 = vrot.lane.b32.xlu0 %v1254, 96
        %v1302 = vpop.permute.xlu0 %1301
        %v1319 = vsel %vm442, %v301, %v1272
        %v1320 = vsel %vm442, %v302, %v1274
        %v1321 = vsel %vm442, %v303, %v1276
        %v1322 = vsel %vm442, %v304, %v1278
        %v1323 = vsel %vm442, %v305, %v1280
        %v1324 = vsel %vm442, %v306, %v1282
        %v1325 = vsel %vm442, %v307, %v1284
        %v1326 = vsel %vm442, %v308, %v1286
        %v1327 = vsel %vm442, %v309, %v1288
        %v1328 = vsel %vm442, %v310, %v1290
        %v1329 = vsel %vm442, %v311, %v1292
        %v1330 = vsel %vm442, %v312, %v1294
        %v1331 = vsel %vm442, %v313, %v1296
        %v1332 = vsel %vm442, %v314, %v1298
        %v1333 = vsel %vm442, %v315, %v1300
        %v1334 = vsel %vm442, %v316, %v1302
        %1335 = vst [vmem:[%s297] sm:$0xff] %v1319
        %1336 = vst [vmem:[%s297 + $0x8] sm:$0xff] %v1320
        %1337 = vst [vmem:[%s297 + $0x10] sm:$0xff] %v1321
        %1338 = vst [vmem:[%s297 + $0x18] sm:$0xff] %v1322
        %1339 = vst [vmem:[%s297 + $0x20] sm:$0xff] %v1323
        %1340 = vst [vmem:[%s297 + $0x28] sm:$0xff] %v1324
        %1341 = vst [vmem:[%s297 + $0x30] sm:$0xff] %v1325
        %1342 = vst [vmem:[%s297 + $0x38] sm:$0xff] %v1326
        %1343 = vst [vmem:[%s297 + $0x40] sm:$0xff] %v1327
        %1344 = vst [vmem:[%s297 + $0x48] sm:$0xff] %v1328
        %1345 = vst [vmem:[%s297 + $0x50] sm:$0xff] %v1329
        %1346 = vst [vmem:[%s297 + $0x58] sm:$0xff] %v1330
        %1347 = vst [vmem:[%s297 + $0x60] sm:$0xff] %v1331
        %1348 = vst [vmem:[%s297 + $0x68] sm:$0xff] %v1332
        %1349 = vst [vmem:[%s297 + $0x70] sm:$0xff] %v1333
        %1350 = vst [vmem:[%s297 + $0x78] sm:$0xff] %v1334
        %s1351 = sand.u32 %s184, 1
        %s1352 = scalar_lea.sflag [#allocation4], %s1351
        %s1353 = sand.u32 %s184, 1
        %s1354 = smul.addr %s1353, 128
        %s1355 = scalar_lea.vmem [#allocation5], %s1354
        // Predicated region
        $region53: #{dense_layer_forward.1} parent=47 // pred_check
          %p1356 = pneg %p194
        $region54: #{dense_layer_forward.1} parent=47 // pred_check_branch
          %1358 = sbr.rel (%p1356) target = $region56
        $region55: #{dense_layer_forward.1} parent=47 // pred_region
          %s1359 = smul.u32 2, %s24
          %s1361 = ssub.s32 2048, 2048
          %1362 = vsyncadd %s1352, %s1361
          %s1363 = smul.addr %s1359, 8
          %s1364 = smul.addr %s1363, 128
          %s1365 = scalar_lea.hbm %s7, %s1364
          %s1366 = sshll.u32 %s1355, 4
          %s1367 = int_to_ptr.vmem [resolvable:$true] %s1366
          %1372 = dma.vmem_to_hbm [thread:$0]  %s1367, 2048, %s1365, %s1352, 128, 128, 8
        $region56: #{dense_layer_forward.1} parent=47 // pred_fallthru
          _
      $region48: #{dense_layer_forward.1} parent=5 // pred_fallthru
        _
      %p1373 = scmp.le.s32.totalorder 2, %s19
      // Predicated region
      $region57: #{dense_layer_forward.1} parent=5 // pred_check
        %p1374 = pneg %p1373
      $region58: #{dense_layer_forward.1} parent=5 // pred_check_branch
        %1376 = sbr.rel (%p1374) target = $region60
      $region59: #{dense_layer_forward.1} parent=5 // pred_region
        %s1377 = ssub.s32 %s19, 2
        // Predicated region
        $region61: #{dense_layer_forward.1} parent=59 // pred_check
          %p1378 = pneg %p200
        $region62: #{dense_layer_forward.1} parent=59 // pred_check_branch
          %1380 = sbr.rel (%p1378) target = $region64
        $region63: #{dense_layer_forward.1} parent=59 // pred_region
          %s1381 = sand.u32 %s185, 1
          %s1382 = scalar_lea.sflag [#allocation4], %s1381
          %s1383 = sand.u32 %s185, 1
          %s1384 = smul.addr %s1383, 128
          %s1385 = scalar_lea.vmem [#allocation5], %s1384
          %1386 = dma.done %s1382, 2048
        $region64: #{dense_layer_forward.1} parent=59 // pred_fallthru
          _
      $region60: #{dense_layer_forward.1} parent=5 // pred_fallthru
        _
    $region6: #{dense_layer_forward.1} parent=1 // loop_footer
      %s23 = sadd.s32 1, %s19
    $region7: #{dense_layer_forward.1} parent=1 // loop_footer_branch
      %18 = sbr.rel target = $region3
    $region8: #{dense_layer_forward.1} parent=1 // loop_exit
      _
    %1387 = vsyncpa [#allocation3], 1
    %s1388 = scalar_lea.sflag [#allocation3], 1
    %1389 = vsyncpa %s1388, 1
    %1390 = vsyncpa [#allocation4], 1
    %s1391 = scalar_lea.sflag [#allocation4], 1
    %1392 = vsyncpa %s1391, 1

</llo_original>
